<compile_context>
chip_gen: v6e
topology: v6e:2x2x1
jax: 0.10.0
libtpu: 0.0.40
codegen_flags: <defaults>
</compile_context>

<pallas_src>
import functools

import jax
import jax.numpy as jnp
import numpy as np
from jax.experimental import pallas as pl
from jax.experimental.pallas import tpu as pltpu


def _round_up(x, m):
    return ((x + m - 1) // m) * m


def _layer_norm(v, gamma, beta, eps):
    mu = jnp.mean(v, axis=-1, keepdims=True)
    c = v - mu
    var = jnp.mean(c * c, axis=-1, keepdims=True)
    return c * jax.lax.rsqrt(var + eps) * gamma + beta


def _mlp_kernel(x_ref, w1_ref, b1_ref, w2_ref, b2_ref,
                g1_ref, be1_ref, g2_ref, be2_ref, o_ref,
                *, eps, activation, res_con):
    # (tile_rows, d_model) row tile; widen to f32 in-register.
    x = x_ref[...].astype(jnp.float32)

    # LayerNorm 1
    xn = _layer_norm(x, g1_ref[...].astype(jnp.float32),
                     be1_ref[...].astype(jnp.float32), eps)

    # Pointwise "conv1": (tile_rows, d_model) @ (d_model, d_ff) on the MXU.
    h = jnp.dot(xn, w1_ref[...].astype(jnp.float32),
                preferred_element_type=jnp.float32) + b1_ref[...].astype(jnp.float32)
    if activation == "relu":
        h = jnp.maximum(h, 0.0)
    else:  # 'gelu' (tanh approximation)
        h = jax.nn.gelu(h, approximate=True)

    # Pointwise "conv2": (tile_rows, d_ff) @ (d_ff, d_model).
    y = jnp.dot(h, w2_ref[...].astype(jnp.float32),
                preferred_element_type=jnp.float32) + b2_ref[...].astype(jnp.float32)

    if res_con:
        out = _layer_norm(xn + y, g2_ref[...].astype(jnp.float32),
                          be2_ref[...].astype(jnp.float32), eps)
    else:
        out = y

    o_ref[...] = out.astype(o_ref.dtype)


def mlp_layer(x, params, *, tile_rows=512, eps=1e-5, activation="relu", res_con=True):
    """x: (B, L, d_model). params = (w1 (d_model,d_ff), b1 (d_ff,), w2 (d_ff,d_model),
    b2 (d_model,), gamma1, beta1, gamma2, beta2 (all (d_model,)))."""
    w1, b1, w2, b2, g1, be1, g2, be2 = params
    B, L, d_model = x.shape
    d_ff = w1.shape[1]
    assert w1.shape == (d_model, d_ff) and w2.shape == (d_ff, d_model)

    N = B * L
    # Row-tile: multiple of 8 (sublane rule), clamped so tiny inputs still work.
    tm = min(_round_up(tile_rows, 8), _round_up(N, 8))
    Np = _round_up(N, tm)

    x2 = x.reshape(N, d_model)
    if Np != N:
        x2 = jnp.pad(x2, ((0, Np - N), (0, 0)))

    # 2-D views so in-kernel broadcasting is a plain (1, C) row broadcast.
    b1_2 = b1.reshape(1, d_ff)
    b2_2 = b2.reshape(1, d_model)
    g1_2 = g1.reshape(1, d_model)
    be1_2 = be1.reshape(1, d_model)
    g2_2 = g2.reshape(1, d_model)
    be2_2 = be2.reshape(1, d_model)

    grid = (Np // tm,)
    row_spec = pl.BlockSpec((tm, d_model), lambda i: (i, 0))

    def resident(shape):  # constant index_map -> block stays resident in VMEM
        return pl.BlockSpec(shape, lambda i: (0, 0))

    out = pl.pallas_call(
        functools.partial(_mlp_kernel, eps=eps, activation=activation, res_con=res_con),
        out_shape=jax.ShapeDtypeStruct((Np, d_model), x.dtype),
        grid_spec=pltpu.PrefetchScalarGridSpec(
            num_scalar_prefetch=0,
            grid=grid,
            in_specs=[
                row_spec,                       # x row tile
                resident((d_model, d_ff)),      # W1
                resident((1, d_ff)),            # b1
                resident((d_ff, d_model)),      # W2
                resident((1, d_model)),         # b2
                resident((1, d_model)),         # gamma1
                resident((1, d_model)),         # beta1
                resident((1, d_model)),         # gamma2
                resident((1, d_model)),         # beta2
            ],
            out_specs=row_spec,
        ),
        compiler_params=pltpu.CompilerParams(
            dimension_semantics=("parallel",),  # rows independent -> multi-TC shardable
        ),
    )(x2, w1, b1_2, w2, b2_2, g1_2, be1_2, g2_2, be2_2)

    return out[:N].reshape(B, L, d_model)


def _reference(x, params, *, eps=1e-5, activation="relu", res_con=True):
    """Pure-JAX reference matching the PyTorch MLPLayer forward (kernel_size=1, p=0)."""
    w1, b1, w2, b2, g1, be1, g2, be2 = params
    xn = _layer_norm(x, g1, be1, eps)
    h = xn @ w1 + b1
    h = jnp.maximum(h, 0.0) if activation == "relu" else jax.nn.gelu(h, approximate=True)
    y = h @ w2 + b2
    return _layer_norm(xn + y, g2, be2, eps) if res_con else y


if __name__ == "__main__":
    B, L, d_model, d_ff = 2, 8, 32, 64

    key = jax.random.PRNGKey(0)
    ks = jax.random.split(key, 9)
    x = jax.random.normal(ks[0], (B, L, d_model), dtype=jnp.float32)
    w1 = 0.1 * jax.random.normal(ks[1], (d_model, d_ff), dtype=jnp.float32)
    b1 = 0.1 * jax.random.normal(ks[2], (d_ff,), dtype=jnp.float32)
    w2 = 0.1 * jax.random.normal(ks[3], (d_ff, d_model), dtype=jnp.float32)
    b2 = 0.1 * jax.random.normal(ks[4], (d_model,), dtype=jnp.float32)
    g1 = 1.0 + 0.1 * jax.random.normal(ks[5], (d_model,), dtype=jnp.float32)
    be1 = 0.1 * jax.random.normal(ks[6], (d_model,), dtype=jnp.float32)
    g2 = 1.0 + 0.1 * jax.random.normal(ks[7], (d_model,), dtype=jnp.float32)
    be2 = 0.1 * jax.random.normal(ks[8], (d_model,), dtype=jnp.float32)
    params = (w1, b1, w2, b2, g1, be1, g2, be2)

    out = mlp_layer(x, params, activation="relu", res_con=True)
    out = jax.block_until_ready(out)

    ref = _reference(x, params, activation="relu", res_con=True)
    assert out.shape == (B, L, d_model)
    err = np.max(np.abs(np.asarray(out) - np.asarray(ref)))
    assert np.allclose(np.asarray(out), np.asarray(ref), rtol=1e-4, atol=1e-5), err

    print("KERNEL_OK")
</pallas_src>

<mosaic_0001>
module attributes {stable_mosaic.version = 11 : i64} {
  func.func @_mlp_kernel(%arg0: i32, %arg1: memref<16x32xf32, #tpu.memory_space<vmem>>, %arg2: memref<32x64xf32, #tpu.memory_space<vmem>>, %arg3: memref<1x64xf32, #tpu.memory_space<vmem>>, %arg4: memref<64x32xf32, #tpu.memory_space<vmem>>, %arg5: memref<1x32xf32, #tpu.memory_space<vmem>>, %arg6: memref<1x32xf32, #tpu.memory_space<vmem>>, %arg7: memref<1x32xf32, #tpu.memory_space<vmem>>, %arg8: memref<1x32xf32, #tpu.memory_space<vmem>>, %arg9: memref<1x32xf32, #tpu.memory_space<vmem>>, %arg10: memref<16x32xf32, #tpu.memory_space<vmem>>) attributes {dimension_semantics = [#tpu.dimension_semantics<parallel>], iteration_bounds = array<i64: 1>, scalar_prefetch = 0 : i64, scratch_operands = 0 : i64, tpu.core_type = #tpu.core_type<tc>, window_params = [{transform_indices = @transform_0, window_bounds = array<i64: 16, 32>}, {pipeline_mode = #tpu.pipeline_mode<synchronous>, transform_indices = @transform_1, window_bounds = array<i64: 32, 64>}, {pipeline_mode = #tpu.pipeline_mode<synchronous>, transform_indices = @transform_2, window_bounds = array<i64: 1, 64>}, {pipeline_mode = #tpu.pipeline_mode<synchronous>, transform_indices = @transform_3, window_bounds = array<i64: 64, 32>}, {pipeline_mode = #tpu.pipeline_mode<synchronous>, transform_indices = @transform_4, window_bounds = array<i64: 1, 32>}, {pipeline_mode = #tpu.pipeline_mode<synchronous>, transform_indices = @transform_5, window_bounds = array<i64: 1, 32>}, {pipeline_mode = #tpu.pipeline_mode<synchronous>, transform_indices = @transform_6, window_bounds = array<i64: 1, 32>}, {pipeline_mode = #tpu.pipeline_mode<synchronous>, transform_indices = @transform_7, window_bounds = array<i64: 1, 32>}, {pipeline_mode = #tpu.pipeline_mode<synchronous>, transform_indices = @transform_8, window_bounds = array<i64: 1, 32>}, {transform_indices = @transform_9, window_bounds = array<i64: 16, 32>}]} {
    %c0 = arith.constant 0 : index
    %c0_0 = arith.constant 0 : index
    %0 = vector.load %arg1[%c0, %c0_0] : memref<16x32xf32, #tpu.memory_space<vmem>>, vector<16x32xf32>
    %c0_1 = arith.constant 0 : index
    %c0_2 = arith.constant 0 : index
    %1 = vector.load %arg6[%c0_1, %c0_2] : memref<1x32xf32, #tpu.memory_space<vmem>>, vector<1x32xf32>
    %c0_3 = arith.constant 0 : index
    %c0_4 = arith.constant 0 : index
    %2 = vector.load %arg7[%c0_3, %c0_4] : memref<1x32xf32, #tpu.memory_space<vmem>>, vector<1x32xf32>
    %cst = arith.constant dense<0.000000e+00> : vector<16xf32>
    %3 = vector.multi_reduction <add>, %0, %cst [1] : vector<16x32xf32> to vector<16xf32>
    %4 = vector.shape_cast %3 : vector<16xf32> to vector<16x1xf32>
    %cst_5 = arith.constant 3.200000e+01 : f32
    %5 = vector.broadcast %cst_5 : f32 to vector<16x1xf32>
    %6 = arith.divf %4, %5 : vector<16x1xf32>
    %7 = vector.broadcast %6 : vector<16x1xf32> to vector<16x32xf32>
    %8 = arith.subf %0, %7 : vector<16x32xf32>
    %9 = arith.mulf %8, %8 : vector<16x32xf32>
    %cst_6 = arith.constant dense<0.000000e+00> : vector<16xf32>
    %10 = vector.multi_reduction <add>, %9, %cst_6 [1] : vector<16x32xf32> to vector<16xf32>
    %11 = vector.shape_cast %10 : vector<16xf32> to vector<16x1xf32>
    %cst_7 = arith.constant 3.200000e+01 : f32
    %12 = vector.broadcast %cst_7 : f32 to vector<16x1xf32>
    %13 = arith.divf %11, %12 : vector<16x1xf32>
    %cst_8 = arith.constant 9.99999974E-6 : f32
    %14 = vector.broadcast %cst_8 : f32 to vector<16x1xf32>
    %15 = arith.addf %13, %14 : vector<16x1xf32>
    %16 = math.rsqrt %15 : vector<16x1xf32>
    %17 = vector.broadcast %16 : vector<16x1xf32> to vector<16x32xf32>
    %18 = arith.mulf %8, %17 : vector<16x32xf32>
    %19 = vector.broadcast %1 : vector<1x32xf32> to vector<16x32xf32>
    %20 = arith.mulf %18, %19 : vector<16x32xf32>
    %21 = vector.broadcast %2 : vector<1x32xf32> to vector<16x32xf32>
    %22 = arith.addf %20, %21 : vector<16x32xf32>
    %c0_9 = arith.constant 0 : index
    %c0_10 = arith.constant 0 : index
    %23 = vector.load %arg2[%c0_9, %c0_10] : memref<32x64xf32, #tpu.memory_space<vmem>>, vector<32x64xf32>
    %cst_11 = arith.constant dense<0.000000e+00> : vector<16x64xf32>
    %24 = tpu.matmul %22, %23, %cst_11 {dimension_numbers = #tpu.dot_dimension_numbers<[1], [0], [0], [1], [0, 0, 1, 1], [], []>} : vector<16x32xf32>, vector<32x64xf32>, vector<16x64xf32> -> vector<16x64xf32>
    %c0_12 = arith.constant 0 : index
    %c0_13 = arith.constant 0 : index
    %25 = vector.load %arg3[%c0_12, %c0_13] : memref<1x64xf32, #tpu.memory_space<vmem>>, vector<1x64xf32>
    %26 = vector.broadcast %25 : vector<1x64xf32> to vector<16x64xf32>
    %27 = arith.addf %24, %26 : vector<16x64xf32>
    %cst_14 = arith.constant 0.000000e+00 : f32
    %28 = vector.broadcast %cst_14 : f32 to vector<16x64xf32>
    %29 = arith.maximumf %27, %28 : vector<16x64xf32>
    %c0_15 = arith.constant 0 : index
    %c0_16 = arith.constant 0 : index
    %30 = vector.load %arg4[%c0_15, %c0_16] : memref<64x32xf32, #tpu.memory_space<vmem>>, vector<64x32xf32>
    %cst_17 = arith.constant dense<0.000000e+00> : vector<16x32xf32>
    %31 = tpu.matmul %29, %30, %cst_17 {dimension_numbers = #tpu.dot_dimension_numbers<[1], [0], [0], [1], [0, 0, 1, 1], [], []>} : vector<16x64xf32>, vector<64x32xf32>, vector<16x32xf32> -> vector<16x32xf32>
    %c0_18 = arith.constant 0 : index
    %c0_19 = arith.constant 0 : index
    %32 = vector.load %arg5[%c0_18, %c0_19] : memref<1x32xf32, #tpu.memory_space<vmem>>, vector<1x32xf32>
    %33 = vector.broadcast %32 : vector<1x32xf32> to vector<16x32xf32>
    %34 = arith.addf %31, %33 : vector<16x32xf32>
    %35 = arith.addf %22, %34 : vector<16x32xf32>
    %c0_20 = arith.constant 0 : index
    %c0_21 = arith.constant 0 : index
    %36 = vector.load %arg8[%c0_20, %c0_21] : memref<1x32xf32, #tpu.memory_space<vmem>>, vector<1x32xf32>
    %c0_22 = arith.constant 0 : index
    %c0_23 = arith.constant 0 : index
    %37 = vector.load %arg9[%c0_22, %c0_23] : memref<1x32xf32, #tpu.memory_space<vmem>>, vector<1x32xf32>
    %cst_24 = arith.constant dense<0.000000e+00> : vector<16xf32>
    %38 = vector.multi_reduction <add>, %35, %cst_24 [1] : vector<16x32xf32> to vector<16xf32>
    %39 = vector.shape_cast %38 : vector<16xf32> to vector<16x1xf32>
    %cst_25 = arith.constant 3.200000e+01 : f32
    %40 = vector.broadcast %cst_25 : f32 to vector<16x1xf32>
    %41 = arith.divf %39, %40 : vector<16x1xf32>
    %42 = vector.broadcast %41 : vector<16x1xf32> to vector<16x32xf32>
    %43 = arith.subf %35, %42 : vector<16x32xf32>
    %44 = arith.mulf %43, %43 : vector<16x32xf32>
    %cst_26 = arith.constant dense<0.000000e+00> : vector<16xf32>
    %45 = vector.multi_reduction <add>, %44, %cst_26 [1] : vector<16x32xf32> to vector<16xf32>
    %46 = vector.shape_cast %45 : vector<16xf32> to vector<16x1xf32>
    %cst_27 = arith.constant 3.200000e+01 : f32
    %47 = vector.broadcast %cst_27 : f32 to vector<16x1xf32>
    %48 = arith.divf %46, %47 : vector<16x1xf32>
    %cst_28 = arith.constant 9.99999974E-6 : f32
    %49 = vector.broadcast %cst_28 : f32 to vector<16x1xf32>
    %50 = arith.addf %48, %49 : vector<16x1xf32>
    %51 = math.rsqrt %50 : vector<16x1xf32>
    %52 = vector.broadcast %51 : vector<16x1xf32> to vector<16x32xf32>
    %53 = arith.mulf %43, %52 : vector<16x32xf32>
    %54 = vector.broadcast %36 : vector<1x32xf32> to vector<16x32xf32>
    %55 = arith.mulf %53, %54 : vector<16x32xf32>
    %56 = vector.broadcast %37 : vector<1x32xf32> to vector<16x32xf32>
    %57 = arith.addf %55, %56 : vector<16x32xf32>
    %c0_29 = arith.constant 0 : index
    %c0_30 = arith.constant 0 : index
    %58 = vector.load %arg10[%c0_29, %c0_30] : memref<16x32xf32, #tpu.memory_space<vmem>>, vector<16x32xf32>
    tpu.vector_store %arg10[%c0_29, %c0_30], %57 {strides = array<i32>} : memref<16x32xf32, #tpu.memory_space<vmem>>, vector<16x32xf32>,
    return
  }
  func.func @transform_0(%arg0: i32) -> (i32, i32) {
    %c0_i32 = arith.constant 0 : i32
    %c0_i32_0 = arith.constant 0 : i32
    return %arg0, %c0_i32 : i32, i32
  }
  func.func @transform_1(%arg0: i32) -> (i32, i32) {
    %c0_i32 = arith.constant 0 : i32
    %c0_i32_0 = arith.constant 0 : i32
    %c0_i32_1 = arith.constant 0 : i32
    return %c0_i32, %c0_i32_0 : i32, i32
  }
  func.func @transform_2(%arg0: i32) -> (i32, i32) {
    %c0_i32 = arith.constant 0 : i32
    %c0_i32_0 = arith.constant 0 : i32
    %c0_i32_1 = arith.constant 0 : i32
    return %c0_i32, %c0_i32_0 : i32, i32
  }
  func.func @transform_3(%arg0: i32) -> (i32, i32) {
    %c0_i32 = arith.constant 0 : i32
    %c0_i32_0 = arith.constant 0 : i32
    %c0_i32_1 = arith.constant 0 : i32
    return %c0_i32, %c0_i32_0 : i32, i32
  }
  func.func @transform_4(%arg0: i32) -> (i32, i32) {
    %c0_i32 = arith.constant 0 : i32
    %c0_i32_0 = arith.constant 0 : i32
    %c0_i32_1 = arith.constant 0 : i32
    return %c0_i32, %c0_i32_0 : i32, i32
  }
  func.func @transform_5(%arg0: i32) -> (i32, i32) {
    %c0_i32 = arith.constant 0 : i32
    %c0_i32_0 = arith.constant 0 : i32
    %c0_i32_1 = arith.constant 0 : i32
    return %c0_i32, %c0_i32_0 : i32, i32
  }
  func.func @transform_6(%arg0: i32) -> (i32, i32) {
    %c0_i32 = arith.constant 0 : i32
    %c0_i32_0 = arith.constant 0 : i32
    %c0_i32_1 = arith.constant 0 : i32
    return %c0_i32, %c0_i32_0 : i32, i32
  }
  func.func @transform_7(%arg0: i32) -> (i32, i32) {
    %c0_i32 = arith.constant 0 : i32
    %c0_i32_0 = arith.constant 0 : i32
    %c0_i32_1 = arith.constant 0 : i32
    return %c0_i32, %c0_i32_0 : i32, i32
  }
  func.func @transform_8(%arg0: i32) -> (i32, i32) {
    %c0_i32 = arith.constant 0 : i32
    %c0_i32_0 = arith.constant 0 : i32
    %c0_i32_1 = arith.constant 0 : i32
    return %c0_i32, %c0_i32_0 : i32, i32
  }
  func.func @transform_9(%arg0: i32) -> (i32, i32) {
    %c0_i32 = arith.constant 0 : i32
    %c0_i32_0 = arith.constant 0 : i32
    return %arg0, %c0_i32 : i32, i32
  }
}

</mosaic_0001>

<llo_original>
// kernel: tpu_custom_call.1
$region0: #{tpu_custom_call.1}
  #allocation0 [shape = 'u32[]', space=smem, size = 0x4, offset = 0x4, fixed_abs, tag = 'smem constant byte address 0x4 - core index']
  #allocation1 [shape = 'u32[144,128]{1,0:T(1,128)}', space=vmem, size = 0x12000, scoped, tag = 'internal scratch']
  %s0 = inlined_call_operand.vmem [shape: f32[16,32], index: 0, kind: input, shape index: {}]
  %s1 = inlined_call_operand.vmem [shape: f32[32,64], index: 1, kind: input, shape index: {}]
  %s2 = inlined_call_operand.vmem [shape: f32[1,64], index: 2, kind: input, shape index: {}]
  %s3 = inlined_call_operand.vmem [shape: f32[64,32], index: 3, kind: input, shape index: {}]
  %s4 = inlined_call_operand.vmem [shape: f32[1,32], index: 4, kind: input, shape index: {}]
  %s5 = inlined_call_operand.vmem [shape: f32[1,32], index: 5, kind: input, shape index: {}]
  %s6 = inlined_call_operand.vmem [shape: f32[1,32], index: 6, kind: input, shape index: {}]
  %s7 = inlined_call_operand.vmem [shape: f32[1,32], index: 7, kind: input, shape index: {}]
  %s8 = inlined_call_operand.vmem [shape: f32[1,32], index: 8, kind: input, shape index: {}]
  %s9 = inlined_call_operand.hbm [shape: f32[16,32], index: 9, kind: output, shape index: {}]
  %s10 = sld [smem:[#allocation0]]
  $region46: #{tpu_custom_call.1} parent=0
    _
  %s12 = ssub.s32 1, %s10
  %s13 = scalar_select 0, %s12, %s10
  $region1: #{tpu_custom_call.1} parent=0
    #allocation2 [shape = 'u8[8192]{0}', space=vmem, size = 0x2000, scoped, tag = 'output window, operand 0, single buffered']
    #allocation3 [shape = 's32[1]{0}', space=sflag, size = 0x4, scoped, tag = 'scoped memory for tpu_custom_call.1']
    %14 = vsyncpa [#allocation3], 0
    // Predicated region
    $region2: #{tpu_custom_call.1} parent=1 // pred_check
      _
    $region3: #{tpu_custom_call.1} parent=1 // pred_check_branch
      %16 = sbr.rel (0) target = $region5
    $region4: #{tpu_custom_call.1} parent=1 // pred_region
      _
    $region5: #{tpu_custom_call.1} parent=1 // pred_fallthru
      _
    // Predicated region
    $region6: #{tpu_custom_call.1} parent=1 // pred_check
      _
    $region7: #{tpu_custom_call.1} parent=1 // pred_check_branch
      %18 = sbr.rel (0) target = $region9
    $region8: #{tpu_custom_call.1} parent=1 // pred_region
      _
    $region9: #{tpu_custom_call.1} parent=1 // pred_fallthru
      _
    // Predicated region
    $region10: #{tpu_custom_call.1} parent=1 // pred_check
      _
    $region11: #{tpu_custom_call.1} parent=1 // pred_check_branch
      %20 = sbr.rel (0) target = $region13
    $region12: #{tpu_custom_call.1} parent=1 // pred_region
      _
    $region13: #{tpu_custom_call.1} parent=1 // pred_fallthru
      _
    // Predicated region
    $region14: #{tpu_custom_call.1} parent=1 // pred_check
      _
    $region15: #{tpu_custom_call.1} parent=1 // pred_check_branch
      %22 = sbr.rel (0) target = $region17
    $region16: #{tpu_custom_call.1} parent=1 // pred_region
      _
    $region17: #{tpu_custom_call.1} parent=1 // pred_fallthru
      _
    // Predicated region
    $region18: #{tpu_custom_call.1} parent=1 // pred_check
      _
    $region19: #{tpu_custom_call.1} parent=1 // pred_check_branch
      %24 = sbr.rel (0) target = $region21
    $region20: #{tpu_custom_call.1} parent=1 // pred_region
      _
    $region21: #{tpu_custom_call.1} parent=1 // pred_fallthru
      _
    // Predicated region
    $region22: #{tpu_custom_call.1} parent=1 // pred_check
      _
    $region23: #{tpu_custom_call.1} parent=1 // pred_check_branch
      %26 = sbr.rel (0) target = $region25
    $region24: #{tpu_custom_call.1} parent=1 // pred_region
      _
    $region25: #{tpu_custom_call.1} parent=1 // pred_fallthru
      _
    // Predicated region
    $region26: #{tpu_custom_call.1} parent=1 // pred_check
      _
    $region27: #{tpu_custom_call.1} parent=1 // pred_check_branch
      %28 = sbr.rel (0) target = $region29
    $region28: #{tpu_custom_call.1} parent=1 // pred_region
      _
    $region29: #{tpu_custom_call.1} parent=1 // pred_fallthru
      _
    // Predicated region
    $region30: #{tpu_custom_call.1} parent=1 // pred_check
      _
    $region31: #{tpu_custom_call.1} parent=1 // pred_check_branch
      %30 = sbr.rel (0) target = $region33
    $region32: #{tpu_custom_call.1} parent=1 // pred_region
      _
    $region33: #{tpu_custom_call.1} parent=1 // pred_fallthru
      _
    // Predicated region
    $region34: #{tpu_custom_call.1} parent=1 // pred_check
      _
    $region35: #{tpu_custom_call.1} parent=1 // pred_check_branch
      %32 = sbr.rel (0) target = $region37
    $region36: #{tpu_custom_call.1} parent=1 // pred_region
      _
    $region37: #{tpu_custom_call.1} parent=1 // pred_fallthru
      _
    %v33 = vld [vmem:[%s0] sm:$0xff]
    %v34 = vld [vmem:[%s0 + $0x8] sm:$0xff]
    %v35 = vld [vmem:[%s5] sm:$0x1]
    %v36 = vld [vmem:[%s6] sm:$0x1]
    %vm37 = vcmask 261120
    %v38 = vsel %vm37, %v33, 0.0
    %39 = vadd.xlane.f32.xlu0 %v38
    %v40 = vpop.xlane.xlu0 %39
    %v41 = vsel %vm37, %v34, 0.0
    %42 = vadd.xlane.f32.xlu0 %v41
    %v43 = vpop.xlane.xlu0 %42
    %v44 = vrcp.pop 32.0
    %v45 = vmul.f32 %v40, %v44
    %v46 = vmul.f32 %v43, %v44
    %v47 = vsub.f32 %v33, %v45
    %v48 = vsub.f32 %v34, %v46
    %v49 = vmul.f32 %v47, %v47
    %v50 = vmul.f32 %v48, %v48
    %v51 = vsel %vm37, %v49, 0.0
    %52 = vadd.xlane.f32.xlu0 %v51
    %v53 = vpop.xlane.xlu0 %52
    %v54 = vsel %vm37, %v50, 0.0
    %55 = vadd.xlane.f32.xlu0 %v54
    %v56 = vpop.xlane.xlu0 %55
    %v57 = vmul.f32 %v53, %v44
    %v58 = vmul.f32 %v56, %v44
    %v59 = vadd.f32 %v57, 1e-05
    %v60 = vadd.f32 %v58, 1e-05
    %v61 = vrsqrt.pop %v59
    %v62 = vrsqrt.pop %v60
    %v63 = vmul.f32 %v47, %v61
    %v64 = vmul.f32 %v48, %v62
    %v66 = vlaneseq
    %v67 = vshrl.u32 %v66, 7
    %v68 = vsub.s32 0, %v67
    %v69 = vrot.slane %v35, %v68
    %v71 = vmul.f32 %v63, %v69
    %v72 = vmul.f32 %v64, %v69
    %v74 = vlaneseq
    %v75 = vshrl.u32 %v74, 7
    %v76 = vsub.s32 0, %v75
    %v77 = vrot.slane %v36, %v76
    %v79 = vadd.f32 %v71, %v77
    %v80 = vadd.f32 %v72, %v77
    %v81 = vld [vmem:[%s1] sm:$0xff]
    %v82 = vld [vmem:[%s1 + $0x8] sm:$0xff]
    %v83 = vld [vmem:[%s1 + $0x10] sm:$0xff]
    %v84 = vld [vmem:[%s1 + $0x18] sm:$0xff]
    %v85 = vld [vmem:[%s2] sm:$0x1]
    %v87 = vlaneseq
    %v88 = vshrl.u32 %v87, 7
    %v89 = vsub.s32 0, %v88
    %v90 = vrot.slane %v85, %v89
    %v93 = vsel %vm37, %v79, 0
    %v96 = vsel %vm37, %v80, 0
    %98 = vmatprep.subr.mxu0 0.0
    %99 = vmatpush1.msra.mxu0 0.0
    %100 = vmatprep.subr.mxu0 0.0
    %101 = vmatpush1.msra.mxu0 0.0
    %102 = vmatprep.subr.mxu0 0.0
    %103 = vmatpush1.msra.mxu0 0.0
    %104 = vmatprep.subr.mxu0 0.0
    %105 = vmatpush1.msra.mxu0 0.0
    %106 = vmatprep.subr.mxu0 0.0
    %107 = vmatpush1.msra.mxu0 0.0
    %108 = vmatprep.subr.mxu0 0.0
    %109 = vmatpush1.msra.mxu0 0.0
    %110 = vmatprep.subr.mxu0 0.0
    %111 = vmatpush1.msra.mxu0 0.0
    %112 = vmatprep.subr.mxu0 0.0
    %113 = vmatpush1.msra.mxu0 0.0
    %114 = vmatprep.subr.mxu0 0.0
    %115 = vmatpush1.msra.mxu0 0.0
    %116 = vmatprep.subr.mxu0 0.0
    %117 = vmatpush1.msra.mxu0 0.0
    %118 = vmatprep.subr.mxu0 0.0
    %119 = vmatpush1.msra.mxu0 0.0
    %120 = vmatprep.subr.mxu0 0.0
    %121 = vmatpush1.msra.mxu0 0.0
    %122 = vmatprep.subr.mxu0 0.0
    %123 = vmatpush1.msra.mxu0 %v84
    %124 = vmatprep.subr.mxu0 0.0
    %125 = vmatpush1.msra.mxu0 %v83
    %126 = vmatprep.subr.mxu0 0.0
    %127 = vmatpush1.msra.mxu0 %v82
    %128 = vmatprep.subr.mxu0 0.0
    %129 = vmatpush1.msra.mxu0 %v81
    %130 = vmatprep.subr.mxu0 0.0
    %131 = vmatpush2.msra.mxu0 0.0
    %132 = vmatprep.subr.mxu0 0.0
    %133 = vmatpush2.msra.mxu0 0.0
    %134 = vmatprep.subr.mxu0 0.0
    %135 = vmatpush2.msra.mxu0 0.0
    %136 = vmatprep.subr.mxu0 0.0
    %137 = vmatpush2.msra.mxu0 0.0
    %138 = vmatprep.subr.mxu0 0.0
    %139 = vmatpush2.msra.mxu0 0.0
    %140 = vmatprep.subr.mxu0 0.0
    %141 = vmatpush2.msra.mxu0 0.0
    %142 = vmatprep.subr.mxu0 0.0
    %143 = vmatpush2.msra.mxu0 0.0
    %144 = vmatprep.subr.mxu0 0.0
    %145 = vmatpush2.msra.mxu0 0.0
    %146 = vmatprep.subr.mxu0 0.0
    %147 = vmatpush2.msra.mxu0 0.0
    %148 = vmatprep.subr.mxu0 0.0
    %149 = vmatpush2.msra.mxu0 0.0
    %150 = vmatprep.subr.mxu0 0.0
    %151 = vmatpush2.msra.mxu0 0.0
    %152 = vmatprep.subr.mxu0 0.0
    %153 = vmatpush2.msra.mxu0 0.0
    %154 = vmatprep.subr.mxu0 0.0
    %155 = vmatpush2.msra.mxu0 0.0
    %156 = vmatprep.subr.mxu0 0.0
    %157 = vmatpush2.msra.mxu0 0.0
    %158 = vmatprep.subr.mxu0 0.0
    %159 = vmatpush2.msra.mxu0 0.0
    %160 = vmatprep.subr.mxu0 0.0
    %161 = vmatpush2.msra.mxu0 0.0
    %162 = vmatprep.mubr.f32.mxu0 0.0
    %163 = vmatmul.mubr.f32.gmra.mxu0 %v93
    %v164 = vpop.f32.mrf.mxu0
    %v165 = vadd.f32 %v90, %v164
    %v166 = vpop.f32.mrf.mxu0
    %167 = vmatprep.mubr.f32.mxu0 0.0
    %168 = vmatmul.mubr.f32.gmra.mxu0 %v96
    %v169 = vpop.f32.mrf.mxu0
    %v170 = vadd.f32 %v90, %v169
    %v171 = vpop.f32.mrf.mxu0
    %172 = vdwg.mxu0
    %v173 = vmax.f32 %v165, 0.0
    %v174 = vmax.f32 %v170, 0.0
    %v175 = vld [vmem:[%s3] sm:$0xff]
    %v176 = vld [vmem:[%s3 + $0x8] sm:$0xff]
    %v177 = vld [vmem:[%s3 + $0x10] sm:$0xff]
    %v178 = vld [vmem:[%s3 + $0x18] sm:$0xff]
    %v179 = vld [vmem:[%s3 + $0x20] sm:$0xff]
    %v180 = vld [vmem:[%s3 + $0x28] sm:$0xff]
    %v181 = vld [vmem:[%s3 + $0x30] sm:$0xff]
    %v182 = vld [vmem:[%s3 + $0x38] sm:$0xff]
    %v183 = vld [vmem:[%s4] sm:$0x1]
    %v185 = vlaneseq
    %v186 = vshrl.u32 %v185, 7
    %v187 = vsub.s32 0, %v186
    %v188 = vrot.slane %v183, %v187
    %vm190 = vcmask 523264
    %v192 = vsel %vm190, %v173, 0
    %v195 = vsel %vm190, %v174, 0
    %197 = vmatprep.subr.mxu0 0.0
    %198 = vmatpush1.msra.mxu0 0.0
    %199 = vmatprep.subr.mxu0 0.0
    %200 = vmatpush1.msra.mxu0 0.0
    %201 = vmatprep.subr.mxu0 0.0
    %202 = vmatpush1.msra.mxu0 0.0
    %203 = vmatprep.subr.mxu0 0.0
    %204 = vmatpush1.msra.mxu0 0.0
    %205 = vmatprep.subr.mxu0 0.0
    %206 = vmatpush1.msra.mxu0 0.0
    %207 = vmatprep.subr.mxu0 0.0
    %208 = vmatpush1.msra.mxu0 0.0
    %209 = vmatprep.subr.mxu0 0.0
    %210 = vmatpush1.msra.mxu0 0.0
    %211 = vmatprep.subr.mxu0 0.0
    %212 = vmatpush1.msra.mxu0 0.0
    %213 = vmatprep.subr.mxu0 0.0
    %214 = vmatpush1.msra.mxu0 %v182
    %215 = vmatprep.subr.mxu0 0.0
    %216 = vmatpush1.msra.mxu0 %v181
    %217 = vmatprep.subr.mxu0 0.0
    %218 = vmatpush1.msra.mxu0 %v180
    %219 = vmatprep.subr.mxu0 0.0
    %220 = vmatpush1.msra.mxu0 %v179
    %221 = vmatprep.subr.mxu0 0.0
    %222 = vmatpush1.msra.mxu0 %v178
    %223 = vmatprep.subr.mxu0 0.0
    %224 = vmatpush1.msra.mxu0 %v177
    %225 = vmatprep.subr.mxu0 0.0
    %226 = vmatpush1.msra.mxu0 %v176
    %227 = vmatprep.subr.mxu0 0.0
    %228 = vmatpush1.msra.mxu0 %v175
    %229 = vmatprep.subr.mxu0 0.0
    %230 = vmatpush2.msra.mxu0 0.0
    %231 = vmatprep.subr.mxu0 0.0
    %232 = vmatpush2.msra.mxu0 0.0
    %233 = vmatprep.subr.mxu0 0.0
    %234 = vmatpush2.msra.mxu0 0.0
    %235 = vmatprep.subr.mxu0 0.0
    %236 = vmatpush2.msra.mxu0 0.0
    %237 = vmatprep.subr.mxu0 0.0
    %238 = vmatpush2.msra.mxu0 0.0
    %239 = vmatprep.subr.mxu0 0.0
    %240 = vmatpush2.msra.mxu0 0.0
    %241 = vmatprep.subr.mxu0 0.0
    %242 = vmatpush2.msra.mxu0 0.0
    %243 = vmatprep.subr.mxu0 0.0
    %244 = vmatpush2.msra.mxu0 0.0
    %245 = vmatprep.subr.mxu0 0.0
    %246 = vmatpush2.msra.mxu0 0.0
    %247 = vmatprep.subr.mxu0 0.0
    %248 = vmatpush2.msra.mxu0 0.0
    %249 = vmatprep.subr.mxu0 0.0
    %250 = vmatpush2.msra.mxu0 0.0
    %251 = vmatprep.subr.mxu0 0.0
    %252 = vmatpush2.msra.mxu0 0.0
    %253 = vmatprep.subr.mxu0 0.0
    %254 = vmatpush2.msra.mxu0 0.0
    %255 = vmatprep.subr.mxu0 0.0
    %256 = vmatpush2.msra.mxu0 0.0
    %257 = vmatprep.subr.mxu0 0.0
    %258 = vmatpush2.msra.mxu0 0.0
    %259 = vmatprep.subr.mxu0 0.0
    %260 = vmatpush2.msra.mxu0 0.0
    %261 = vmatprep.mubr.f32.mxu0 0.0
    %262 = vmatmul.mubr.f32.gmra.mxu0 %v192
    %v263 = vpop.f32.mrf.mxu0
    %v264 = vadd.f32 %v188, %v263
    %v265 = vpop.f32.mrf.mxu0
    %266 = vmatprep.mubr.f32.mxu0 0.0
    %267 = vmatmul.mubr.f32.gmra.mxu0 %v195
    %v268 = vpop.f32.mrf.mxu0
    %v269 = vadd.f32 %v188, %v268
    %v270 = vpop.f32.mrf.mxu0
    %271 = vdwg.mxu0
    %v272 = vadd.f32 %v79, %v264
    %v273 = vadd.f32 %v80, %v269
    %v274 = vld [vmem:[%s7] sm:$0x1]
    %v275 = vld [vmem:[%s8] sm:$0x1]
    %v276 = vsel %vm37, %v272, 0.0
    %277 = vadd.xlane.f32.xlu0 %v276
    %v278 = vpop.xlane.xlu0 %277
    %v279 = vsel %vm37, %v273, 0.0
    %280 = vadd.xlane.f32.xlu0 %v279
    %v281 = vpop.xlane.xlu0 %280
    %v282 = vmul.f32 %v278, %v44
    %v283 = vmul.f32 %v281, %v44
    %v284 = vsub.f32 %v272, %v282
    %v285 = vsub.f32 %v273, %v283
    %v286 = vmul.f32 %v284, %v284
    %v287 = vmul.f32 %v285, %v285
    %v288 = vsel %vm37, %v286, 0.0
    %289 = vadd.xlane.f32.xlu0 %v288
    %v290 = vpop.xlane.xlu0 %289
    %v291 = vsel %vm37, %v287, 0.0
    %292 = vadd.xlane.f32.xlu0 %v291
    %v293 = vpop.xlane.xlu0 %292
    %v294 = vmul.f32 %v290, %v44
    %v295 = vmul.f32 %v293, %v44
    %v296 = vadd.f32 %v294, 1e-05
    %v297 = vadd.f32 %v295, 1e-05
    %v298 = vrsqrt.pop %v296
    %v299 = vrsqrt.pop %v297
    %v300 = vmul.f32 %v284, %v298
    %v301 = vmul.f32 %v285, %v299
    %v303 = vlaneseq
    %v304 = vshrl.u32 %v303, 7
    %v305 = vsub.s32 0, %v304
    %v306 = vrot.slane %v274, %v305
    %v308 = vmul.f32 %v300, %v306
    %v309 = vmul.f32 %v301, %v306
    %v311 = vlaneseq
    %v312 = vshrl.u32 %v311, 7
    %v313 = vsub.s32 0, %v312
    %v314 = vrot.slane %v275, %v313
    %v316 = vadd.f32 %v308, %v314
    %v317 = vadd.f32 %v309, %v314
    %318 = vst.msk [vmem:[#allocation2] sm:$0xff] %vm37, %v316
    %319 = vst.msk [vmem:[#allocation2 + $0x8] sm:$0xff] %vm37, %v317
    // Predicated region
    $region38: #{tpu_custom_call.1} parent=1 // pred_check
      _
    $region39: #{tpu_custom_call.1} parent=1 // pred_check_branch
      %321 = sbr.rel (0) target = $region41
    $region40: #{tpu_custom_call.1} parent=1 // pred_region
      %s323 = ssub.s32 256, 256
      %324 = vsyncadd [#allocation3], %s323
      %s325 = sshll.u32 [#allocation2], 4
      %s326 = int_to_ptr.vmem [resolvable:$true] %s325
      %331 = dma.vmem_to_hbm [thread:$0]  %s326, 256, %s9, [#allocation3], 128, 128, 8
    $region41: #{tpu_custom_call.1} parent=1 // pred_fallthru
      _
    // Predicated region
    $region42: #{tpu_custom_call.1} parent=1 // pred_check
      _
    $region43: #{tpu_custom_call.1} parent=1 // pred_check_branch
      %333 = sbr.rel (0) target = $region45
    $region44: #{tpu_custom_call.1} parent=1 // pred_region
      %334 = dma.done [#allocation3], 256
    $region45: #{tpu_custom_call.1} parent=1 // pred_fallthru
      _
    %335 = vsyncpa [#allocation3], 1

</llo_original>
